<compile_context>
chip_gen: v5e
topology: v5e:2x2
jax: 0.10.0
libtpu: 0.0.40
codegen_flags: <defaults>
</compile_context>

<pallas_src>
import functools

import jax
import jax.numpy as jnp
import numpy as np
from jax.experimental import pallas as pl
from jax.experimental.pallas import tpu as pltpu


def _down_conv_kernel(x_ref, wmid_ref, wup_ref, wdn_ref, b_ref, o_ref, xp_ref):
    """Fused conv3x3('same') + 2x2 avg-pool + bias on one space-to-depth image.

    x_ref   : (1, Ho, Wo, 4*Cin)  space-to-depth input tile (compute dtype)
    wmid_ref: (12*Cin, TCO)       packed weights for conv row-taps 1, 2
    wup_ref : (6*Cin, TCO)        packed weights for conv row-tap 0
    wdn_ref : (6*Cin, TCO)        packed weights for conv row-tap 3
    b_ref   : (1, TCO) f32        bias
    o_ref   : (1, Ho, Wo, TCO)    output tile
    xp_ref  : VMEM (Ho+2, Wo+2, 4*Cin)  zero-bordered copy of the tile
    """
    _, ho, wo, k4 = x_ref.shape
    tco = o_ref.shape[-1]
    half = k4 // 2
    dt = x_ref.dtype

    # --- zero padding fused into the kernel: zero the 1-pixel halo border and
    #     copy the unpadded tile into the interior of the VMEM scratch.
    xp_ref[0:1, :, :] = jnp.zeros((1, wo + 2, k4), dt)
    xp_ref[ho + 1:ho + 2, :, :] = jnp.zeros((1, wo + 2, k4), dt)
    xp_ref[:, 0:1, :] = jnp.zeros((ho + 2, 1, k4), dt)
    xp_ref[:, wo + 1:wo + 2, :] = jnp.zeros((ho + 2, 1, k4), dt)
    xp_ref[1:ho + 1, 1:wo + 1, :] = x_ref[0]

    def row_group(row_off, ch_lo, ch_hi, w_ref):
        # Per-row-offset im2col: the three column-shifted views concatenated
        # along lanes -> one fat-K matmul (K = 3 * (ch_hi - ch_lo)).
        k = ch_hi - ch_lo
        patch = jnp.concatenate(
            [xp_ref[row_off:row_off + ho, c:c + wo, ch_lo:ch_hi]
             for c in range(3)],
            axis=-1)                                               # (Ho, Wo, 3k)
        out = jnp.dot(patch.reshape(ho * wo, 3 * k), w_ref[...],
                      preferred_element_type=jnp.float32)          # (Ho*Wo, TCO)
        return out.reshape(ho, wo, tco)

    # Row offset 1 carries conv row-taps a=1,2 (all four space-to-depth phases);
    # offsets 0 / 2 carry row-taps a=0 / a=3 and only touch half of the phases,
    # so their structurally-zero weights are skipped via a channel slice.
    # Accumulate in registers (f32) -- no accumulator scratch, single store.
    acc = row_group(1, 0, k4, wmid_ref)
    acc = acc + row_group(0, half, k4, wup_ref)
    acc = acc + row_group(2, 0, half, wdn_ref)

    o_ref[0] = (acc + b_ref[...].reshape(1, 1, tco)).astype(o_ref.dtype)


def _fused_down_conv(xs, w_mid, w_up, w_dn, bias2, out_dtype):
    """xs: (N, Ho, Wo, 4*Cin) space-to-depth input -> (N, Ho, Wo, Cout)."""
    n, ho, wo, k4 = xs.shape
    cout = w_mid.shape[-1]
    # Lane-dense Cout tiles: keeps output blocks small (v7x 64 MiB VMEM) and
    # provides a second parallel grid axis for megacore.
    tco = 128 if cout % 128 == 0 else cout
    grid = (n, cout // tco)

    # TODO(synk): for very large images (e.g. 256x256 inputs with wide Cin)
    # the whole-image block can pressure VMEM; add a manual double-buffered
    # row-tile pipeline (memory_space=pl.ANY + make_async_copy with a 1-row
    # halo) if such shapes become a target.
    return pl.pallas_call(
        _down_conv_kernel,
        out_shape=jax.ShapeDtypeStruct((n, ho, wo, cout), out_dtype),
        grid_spec=pltpu.PrefetchScalarGridSpec(
            num_scalar_prefetch=0,
            grid=grid,
            in_specs=[
                pl.BlockSpec((1, ho, wo, k4), lambda i, j: (i, 0, 0, 0)),
                # Weights / bias are grid-invariant per Cout tile (index_map is
                # constant in i, so they are not re-fetched across the batch).
                # TODO(synk): single-buffer these invariant operands
                # (pl.Buffered(1)) once that is safe on all target toolchains.
                pl.BlockSpec((w_mid.shape[0], tco), lambda i, j: (0, j)),
                pl.BlockSpec((w_up.shape[0], tco), lambda i, j: (0, j)),
                pl.BlockSpec((w_dn.shape[0], tco), lambda i, j: (0, j)),
                pl.BlockSpec((1, tco), lambda i, j: (0, j)),
            ],
            out_specs=pl.BlockSpec((1, ho, wo, tco), lambda i, j: (i, 0, 0, j)),
            scratch_shapes=[
                pltpu.VMEM((ho + 2, wo + 2, k4), xs.dtype),
            ],
        ),
        compiler_params=pltpu.CompilerParams(
            dimension_semantics=("parallel", "parallel"),
            vmem_limit_bytes=48 * 1024 * 1024,
        ),
    )(xs, w_mid, w_up, w_dn, bias2)


def conv2_down_propia_forward(x, weight, bias, w_mul, b_mul,
                              compute_dtype=jnp.bfloat16):
    """y = avg_pool2x2(conv3x3_same(x, weight*w_mul)) + bias*b_mul, NCHW in/out."""
    n, cin, h, w = x.shape
    cout = weight.shape[0]
    assert h % 2 == 0 and w % 2 == 0, "Conv2DownPropia needs even spatial dims"
    ho, wo = h // 2, w // 2

    # --- smoothed 4x4 kernel (the 2x2 avg-pool folded into the conv), HWIO ---
    w_hwio = jnp.transpose(weight * w_mul, (2, 3, 1, 0))            # (3,3,Cin,Cout)
    wp5 = jnp.pad(w_hwio, ((1, 1), (1, 1), (0, 0), (0, 0)))
    w4 = 0.25 * (wp5[1:, 1:] + wp5[:-1, 1:] + wp5[1:, :-1] + wp5[:-1, :-1])

    # --- pack per-row-offset weight matrices in space-to-depth channel order
    #     (row-phase r, col-phase c, cin), with dx in {-1,0,+1} folded into K.
    def pack(da, ra_list):
        blocks = []
        for db in (-1, 0, 1):
            for ra in ra_list:
                for rb in (0, 1):
                    a = 2 * da + ra + 1
                    b = 2 * db + rb + 1
                    if 0 <= b <= 3:
                        blocks.append(w4[a, b])                     # (Cin, Cout)
                    else:
                        blocks.append(jnp.zeros((cin, cout), w4.dtype))
        return jnp.concatenate(blocks, axis=0).astype(compute_dtype)

    w_mid = pack(0, (0, 1))      # (12*Cin, Cout): conv row-taps 1, 2
    w_up = pack(-1, (1,))        # (6*Cin,  Cout): conv row-tap 0
    w_dn = pack(+1, (0,))        # (6*Cin,  Cout): conv row-tap 3
    bias2 = (bias * b_mul).reshape(1, cout).astype(jnp.float32)

    # --- space-to-depth + channels-last in ONE relayout pass (replaces the
    #     NCHW->NHWC transpose / pad / pool passes); bf16 halves HBM traffic.
    xs = x.astype(compute_dtype).reshape(n, cin, ho, 2, wo, 2)
    xs = jnp.transpose(xs, (0, 2, 4, 3, 5, 1)).reshape(n, ho, wo, 4 * cin)

    y_nhwc = _fused_down_conv(xs, w_mid, w_up, w_dn, bias2, out_dtype=x.dtype)
    return jnp.transpose(y_nhwc, (0, 3, 1, 2))                      # -> NCHW


class Conv2DownPropiaPallas:
    """JAX/Pallas port of Conv2DownPropia (deterministic in-script init)."""

    def __init__(self, input_channels, output_channels, kernel_size=3,
                 gain=np.sqrt(2), key=None):
        # TODO(synk): only the default kernel_size=3 path of the torch module
        # is implemented (the fused downscale identity assumes a 3x3 kernel).
        assert kernel_size == 3
        self.kernel_size = kernel_size
        self.w_mul = float(gain * (input_channels * kernel_size ** 2) ** (-0.5))
        self.b_mul = 1.0
        if key is None:
            key = jax.random.PRNGKey(0)
        # torch.randn(out, in, 3, 3) analogue (OIHW); bias = zeros(out).
        self.weight = jax.random.normal(
            key, (output_channels, input_channels, kernel_size, kernel_size),
            dtype=jnp.float32)
        self.bias = jnp.zeros((output_channels,), dtype=jnp.float32)

    @functools.partial(jax.jit, static_argnums=0)
    def __call__(self, x_nchw):
        # Both torch branches (fused stride-2 smoothed conv for min(H,W)>=128,
        # conv3x3 + Downscale2d otherwise) compute the same function; the
        # single fused Pallas kernel covers both.
        return conv2_down_propia_forward(
            x_nchw, self.weight, self.bias, self.w_mul, self.b_mul)


def _reference_forward(x, weight, bias, w_mul, b_mul):
    """Plain-JAX equivalent of the torch forward (correctness check only)."""
    y = jax.lax.conv_general_dilated(
        x, weight * w_mul, window_strides=(1, 1), padding=((1, 1), (1, 1)),
        dimension_numbers=("NCHW", "OIHW", "NCHW"))
    n, c, h, w = y.shape
    y = y.reshape(n, c, h // 2, 2, w // 2, 2).mean(axis=(3, 5))  # Downscale2d
    return y + (bias * b_mul).reshape(1, -1, 1, 1)


if __name__ == "__main__":
    key = jax.random.PRNGKey(0)
    k_x, k_w = jax.random.split(key)

    N, C_IN, C_OUT, H, W = 2, 4, 8, 16, 16
    x = jax.random.normal(k_x, (N, C_IN, H, W), dtype=jnp.float32)

    module = Conv2DownPropiaPallas(C_IN, C_OUT, key=k_w)
    y = jax.block_until_ready(module(x))
    assert y.shape == (N, C_OUT, H // 2, W // 2), y.shape

    # Numerical check against the plain-JAX equivalent of the PyTorch forward
    # (bf16 matmul operands in the Pallas path -> loose tolerance).
    y_ref = _reference_forward(x, module.weight, module.bias,
                               module.w_mul, module.b_mul)
    err = float(jnp.max(jnp.abs(y - y_ref)))
    assert err < 5e-2, f"max abs error vs reference: {err}"
    print("KERNEL_OK")
</pallas_src>

<mosaic_0001>
module attributes {stable_mosaic.version = 11 : i64} {
  func.func @_down_conv_kernel(%arg0: i32, %arg1: i32, %arg2: memref<1x8x8x16xbf16, #tpu.memory_space<vmem>>, %arg3: memref<48x8xbf16, #tpu.memory_space<vmem>>, %arg4: memref<24x8xbf16, #tpu.memory_space<vmem>>, %arg5: memref<24x8xbf16, #tpu.memory_space<vmem>>, %arg6: memref<1x8xf32, #tpu.memory_space<vmem>>, %arg7: memref<1x8x8x8xf32, #tpu.memory_space<vmem>>, %arg8: memref<10x10x16xbf16, #tpu.memory_space<vmem>>) attributes {dimension_semantics = [#tpu.dimension_semantics<parallel>, #tpu.dimension_semantics<parallel>], iteration_bounds = array<i64: 2, 1>, scalar_prefetch = 0 : i64, scratch_operands = 1 : i64, tpu.core_type = #tpu.core_type<tc>, window_params = [{transform_indices = @transform_0, window_bounds = array<i64: 1, 8, 8, 16>}, {transform_indices = @transform_1, window_bounds = array<i64: 48, 8>}, {transform_indices = @transform_2, window_bounds = array<i64: 24, 8>}, {transform_indices = @transform_3, window_bounds = array<i64: 24, 8>}, {transform_indices = @transform_4, window_bounds = array<i64: 1, 8>}, {transform_indices = @transform_5, window_bounds = array<i64: 1, 8, 8, 8>}]} {
    %cst = arith.constant 0.000000e+00 : bf16
    %0 = vector.broadcast %cst : bf16 to vector<1x10x16xbf16>
    %c0 = arith.constant 0 : index
    %c0_0 = arith.constant 0 : index
    %c0_1 = arith.constant 0 : index
    %1 = vector.load %arg8[%c0, %c0_0, %c0_1] : memref<10x10x16xbf16, #tpu.memory_space<vmem>>, vector<1x10x16xbf16>
    tpu.vector_store %arg8[%c0, %c0_0, %c0_1], %0 {strides = array<i32>} : memref<10x10x16xbf16, #tpu.memory_space<vmem>>, vector<1x10x16xbf16>,
    %cst_2 = arith.constant 0.000000e+00 : bf16
    %2 = vector.broadcast %cst_2 : bf16 to vector<1x10x16xbf16>
    %c9 = arith.constant 9 : index
    %c0_3 = arith.constant 0 : index
    %c0_4 = arith.constant 0 : index
    %3 = vector.load %arg8[%c9, %c0_3, %c0_4] : memref<10x10x16xbf16, #tpu.memory_space<vmem>>, vector<1x10x16xbf16>
    tpu.vector_store %arg8[%c9, %c0_3, %c0_4], %2 {strides = array<i32>} : memref<10x10x16xbf16, #tpu.memory_space<vmem>>, vector<1x10x16xbf16>,
    %cst_5 = arith.constant 0.000000e+00 : bf16
    %4 = vector.broadcast %cst_5 : bf16 to vector<10x1x16xbf16>
    %c0_6 = arith.constant 0 : index
    %c0_7 = arith.constant 0 : index
    %c0_8 = arith.constant 0 : index
    %5 = vector.load %arg8[%c0_6, %c0_7, %c0_8] : memref<10x10x16xbf16, #tpu.memory_space<vmem>>, vector<10x1x16xbf16>
    tpu.vector_store %arg8[%c0_6, %c0_7, %c0_8], %4 {strides = array<i32>} : memref<10x10x16xbf16, #tpu.memory_space<vmem>>, vector<10x1x16xbf16>,
    %cst_9 = arith.constant 0.000000e+00 : bf16
    %6 = vector.broadcast %cst_9 : bf16 to vector<10x1x16xbf16>
    %c0_10 = arith.constant 0 : index
    %c9_11 = arith.constant 9 : index
    %c0_12 = arith.constant 0 : index
    %7 = vector.load %arg8[%c0_10, %c9_11, %c0_12] : memref<10x10x16xbf16, #tpu.memory_space<vmem>>, vector<10x1x16xbf16>
    tpu.vector_store %arg8[%c0_10, %c9_11, %c0_12], %6 {strides = array<i32>} : memref<10x10x16xbf16, #tpu.memory_space<vmem>>, vector<10x1x16xbf16>,
    %c0_13 = arith.constant 0 : index
    %c0_14 = arith.constant 0 : index
    %c0_15 = arith.constant 0 : index
    %c0_16 = arith.constant 0 : index
    %8 = vector.load %arg2[%c0_13, %c0_14, %c0_15, %c0_16] : memref<1x8x8x16xbf16, #tpu.memory_space<vmem>>, vector<1x8x8x16xbf16>
    %9 = vector.shape_cast %8 : vector<1x8x8x16xbf16> to vector<8x8x16xbf16>
    %c1 = arith.constant 1 : index
    %c1_17 = arith.constant 1 : index
    %c0_18 = arith.constant 0 : index
    %10 = vector.load %arg8[%c1, %c1_17, %c0_18] : memref<10x10x16xbf16, #tpu.memory_space<vmem>>, vector<8x8x16xbf16>
    tpu.vector_store %arg8[%c1, %c1_17, %c0_18], %9 {strides = array<i32>} : memref<10x10x16xbf16, #tpu.memory_space<vmem>>, vector<8x8x16xbf16>,
    %c1_19 = arith.constant 1 : index
    %c0_20 = arith.constant 0 : index
    %c0_21 = arith.constant 0 : index
    %11 = vector.load %arg8[%c1_19, %c0_20, %c0_21] : memref<10x10x16xbf16, #tpu.memory_space<vmem>>, vector<8x8x16xbf16>
    %c1_22 = arith.constant 1 : index
    %c1_23 = arith.constant 1 : index
    %c0_24 = arith.constant 0 : index
    %12 = vector.load %arg8[%c1_22, %c1_23, %c0_24] : memref<10x10x16xbf16, #tpu.memory_space<vmem>>, vector<8x8x16xbf16>
    %c1_25 = arith.constant 1 : index
    %c2 = arith.constant 2 : index
    %c0_26 = arith.constant 0 : index
    %13 = vector.load %arg8[%c1_25, %c2, %c0_26] : memref<10x10x16xbf16, #tpu.memory_space<vmem>>, vector<8x8x16xbf16>
    %14 = tpu.concatenate %11, %12, %13 in 2 : vector<8x8x16xbf16>, vector<8x8x16xbf16>, vector<8x8x16xbf16> -> vector<8x8x48xbf16>
    %15 = vector.shape_cast %14 : vector<8x8x48xbf16> to vector<64x48xbf16>
    %c0_27 = arith.constant 0 : index
    %c0_28 = arith.constant 0 : index
    %16 = vector.load %arg3[%c0_27, %c0_28] : memref<48x8xbf16, #tpu.memory_space<vmem>>, vector<48x8xbf16>
    %cst_29 = arith.constant dense<0.000000e+00> : vector<64x8xf32>
    %17 = tpu.matmul %15, %16, %cst_29 {dimension_numbers = #tpu.dot_dimension_numbers<[1], [0], [0], [1], [0, 0, 1, 1], [], []>} : vector<64x48xbf16>, vector<48x8xbf16>, vector<64x8xf32> -> vector<64x8xf32>
    %18 = vector.shape_cast %17 : vector<64x8xf32> to vector<8x8x8xf32>
    %c0_30 = arith.constant 0 : index
    %c0_31 = arith.constant 0 : index
    %c8 = arith.constant 8 : index
    %19 = vector.load %arg8[%c0_30, %c0_31, %c8] : memref<10x10x16xbf16, #tpu.memory_space<vmem>>, vector<8x8x8xbf16>
    %c0_32 = arith.constant 0 : index
    %c1_33 = arith.constant 1 : index
    %c8_34 = arith.constant 8 : index
    %20 = vector.load %arg8[%c0_32, %c1_33, %c8_34] : memref<10x10x16xbf16, #tpu.memory_space<vmem>>, vector<8x8x8xbf16>
    %c0_35 = arith.constant 0 : index
    %c2_36 = arith.constant 2 : index
    %c8_37 = arith.constant 8 : index
    %21 = vector.load %arg8[%c0_35, %c2_36, %c8_37] : memref<10x10x16xbf16, #tpu.memory_space<vmem>>, vector<8x8x8xbf16>
    %22 = tpu.concatenate %19, %20, %21 in 2 : vector<8x8x8xbf16>, vector<8x8x8xbf16>, vector<8x8x8xbf16> -> vector<8x8x24xbf16>
    %23 = vector.shape_cast %22 : vector<8x8x24xbf16> to vector<64x24xbf16>
    %c0_38 = arith.constant 0 : index
    %c0_39 = arith.constant 0 : index
    %24 = vector.load %arg4[%c0_38, %c0_39] : memref<24x8xbf16, #tpu.memory_space<vmem>>, vector<24x8xbf16>
    %cst_40 = arith.constant dense<0.000000e+00> : vector<64x8xf32>
    %25 = tpu.matmul %23, %24, %cst_40 {dimension_numbers = #tpu.dot_dimension_numbers<[1], [0], [0], [1], [0, 0, 1, 1], [], []>} : vector<64x24xbf16>, vector<24x8xbf16>, vector<64x8xf32> -> vector<64x8xf32>
    %26 = vector.shape_cast %25 : vector<64x8xf32> to vector<8x8x8xf32>
    %27 = arith.addf %18, %26 : vector<8x8x8xf32>
    %c2_41 = arith.constant 2 : index
    %c0_42 = arith.constant 0 : index
    %c0_43 = arith.constant 0 : index
    %28 = vector.load %arg8[%c2_41, %c0_42, %c0_43] : memref<10x10x16xbf16, #tpu.memory_space<vmem>>, vector<8x8x8xbf16>
    %c2_44 = arith.constant 2 : index
    %c1_45 = arith.constant 1 : index
    %c0_46 = arith.constant 0 : index
    %29 = vector.load %arg8[%c2_44, %c1_45, %c0_46] : memref<10x10x16xbf16, #tpu.memory_space<vmem>>, vector<8x8x8xbf16>
    %c2_47 = arith.constant 2 : index
    %c2_48 = arith.constant 2 : index
    %c0_49 = arith.constant 0 : index
    %30 = vector.load %arg8[%c2_47, %c2_48, %c0_49] : memref<10x10x16xbf16, #tpu.memory_space<vmem>>, vector<8x8x8xbf16>
    %31 = tpu.concatenate %28, %29, %30 in 2 : vector<8x8x8xbf16>, vector<8x8x8xbf16>, vector<8x8x8xbf16> -> vector<8x8x24xbf16>
    %32 = vector.shape_cast %31 : vector<8x8x24xbf16> to vector<64x24xbf16>
    %c0_50 = arith.constant 0 : index
    %c0_51 = arith.constant 0 : index
    %33 = vector.load %arg5[%c0_50, %c0_51] : memref<24x8xbf16, #tpu.memory_space<vmem>>, vector<24x8xbf16>
    %cst_52 = arith.constant dense<0.000000e+00> : vector<64x8xf32>
    %34 = tpu.matmul %32, %33, %cst_52 {dimension_numbers = #tpu.dot_dimension_numbers<[1], [0], [0], [1], [0, 0, 1, 1], [], []>} : vector<64x24xbf16>, vector<24x8xbf16>, vector<64x8xf32> -> vector<64x8xf32>
    %35 = vector.shape_cast %34 : vector<64x8xf32> to vector<8x8x8xf32>
    %36 = arith.addf %27, %35 : vector<8x8x8xf32>
    %c0_53 = arith.constant 0 : index
    %c0_54 = arith.constant 0 : index
    %37 = vector.load %arg6[%c0_53, %c0_54] : memref<1x8xf32, #tpu.memory_space<vmem>>, vector<1x8xf32>
    %38 = vector.shape_cast %37 : vector<1x8xf32> to vector<1x1x8xf32>
    %39 = vector.broadcast %38 : vector<1x1x8xf32> to vector<8x8x8xf32>
    %40 = arith.addf %36, %39 : vector<8x8x8xf32>
    %c0_55 = arith.constant 0 : index
    %c0_56 = arith.constant 0 : index
    %c0_57 = arith.constant 0 : index
    %c0_58 = arith.constant 0 : index
    %41 = vector.load %arg7[%c0_55, %c0_56, %c0_57, %c0_58] : memref<1x8x8x8xf32, #tpu.memory_space<vmem>>, vector<1x8x8x8xf32>
    %42 = vector.shape_cast %41 : vector<1x8x8x8xf32> to vector<8x8x8xf32>
    %43 = vector.shape_cast %40 : vector<8x8x8xf32> to vector<1x8x8x8xf32>
    tpu.vector_store %arg7[%c0_55, %c0_56, %c0_57, %c0_58], %43 {strides = array<i32>} : memref<1x8x8x8xf32, #tpu.memory_space<vmem>>, vector<1x8x8x8xf32>,
    return
  }
  func.func @transform_0(%arg0: i32, %arg1: i32) -> (i32, i32, i32, i32) {
    %c0_i32 = arith.constant 0 : i32
    %c0_i32_0 = arith.constant 0 : i32
    %c0_i32_1 = arith.constant 0 : i32
    %c0_i32_2 = arith.constant 0 : i32
    return %arg0, %c0_i32, %c0_i32_0, %c0_i32_1 : i32, i32, i32, i32
  }
  func.func @transform_1(%arg0: i32, %arg1: i32) -> (i32, i32) {
    %c0_i32 = arith.constant 0 : i32
    %c0_i32_0 = arith.constant 0 : i32
    return %c0_i32, %arg1 : i32, i32
  }
  func.func @transform_2(%arg0: i32, %arg1: i32) -> (i32, i32) {
    %c0_i32 = arith.constant 0 : i32
    %c0_i32_0 = arith.constant 0 : i32
    return %c0_i32, %arg1 : i32, i32
  }
  func.func @transform_3(%arg0: i32, %arg1: i32) -> (i32, i32) {
    %c0_i32 = arith.constant 0 : i32
    %c0_i32_0 = arith.constant 0 : i32
    return %c0_i32, %arg1 : i32, i32
  }
  func.func @transform_4(%arg0: i32, %arg1: i32) -> (i32, i32) {
    %c0_i32 = arith.constant 0 : i32
    %c0_i32_0 = arith.constant 0 : i32
    return %c0_i32, %arg1 : i32, i32
  }
  func.func @transform_5(%arg0: i32, %arg1: i32) -> (i32, i32, i32, i32) {
    %c0_i32 = arith.constant 0 : i32
    %c0_i32_0 = arith.constant 0 : i32
    %c0_i32_1 = arith.constant 0 : i32
    return %arg0, %c0_i32, %c0_i32_0, %arg1 : i32, i32, i32, i32
  }
}

</mosaic_0001>

<llo_original>
// kernel: a_call__.1
$region0: #{a_call__.1}
  #allocation0 [shape = 'u32[]', space=smem, size = 0x4, offset = 0x4, fixed_abs, tag = 'smem constant byte address 0x4 - core index']
  #allocation1 [shape = 'u32[72,128]{1,0:T(1,128)}', space=vmem, size = 0x9000, scoped, tag = 'internal scratch']
  #allocation2 [shape = 'bf16[10,10,16]{2,1,0:T(8,128)(2,1)}', space=vmem, size = 0xa000, scoped, tag = 'scratch operand']
  %s0 = inlined_call_operand.vmem [shape: bf16[2,8,8,16], index: 0, kind: input, shape index: {}]
  %s1 = inlined_call_operand.vmem [shape: bf16[48,8], index: 1, kind: input, shape index: {}]
  %s2 = inlined_call_operand.vmem [shape: bf16[24,8], index: 2, kind: input, shape index: {}]
  %s3 = inlined_call_operand.vmem [shape: bf16[24,8], index: 3, kind: input, shape index: {}]
  %s4 = inlined_call_operand.vmem [shape: f32[1,8], index: 4, kind: input, shape index: {}]
  %s5 = inlined_call_operand.vmem [shape: f32[2,8,8,8], index: 5, kind: output, shape index: {}]
  %s6 = sld [smem:[#allocation0]]
  $region53: #{a_call__.1} parent=0
    _
  %s8 = ssub.s32 1, %s6
  %s9 = scalar_select 0, %s8, %s6
  loop: start=0, step=1, limit=4
  $region2: #{a_call__.1} parent=0 // loop_pre_header
    _
  $region3: #{a_call__.1} parent=0 // loop_header
    %s11 = sphi 0, %s15
    %p12 = scmp.ge.s32.totalorder %s11, 4
    %s18 = sphi 0, %s30
    %s19 = sphi 0, %s26
    %s20 = sphi 0, %s18
    %s21 = sphi 0, %s19
    %s22 = sphi 0, %s20
    %s23 = sphi 0, %s21
    %s33 = sphi 0, %s35
    %s36 = sphi 0, %s33
    %s37 = sphi 0, %s36
    %s53 = sphi 0, %s37
    %s59 = sphi 0, %s61
    %s62 = sphi 0, %s59
    %s63 = sphi 0, %s62
    %s79 = sphi 0, %s63
    %s85 = sphi 0, %s87
    %s88 = sphi 0, %s85
    %s89 = sphi 0, %s88
    %s105 = sphi 0, %s89
    %s111 = sphi 0, %s113
    %s114 = sphi 0, %s111
    %s115 = sphi 0, %s114
    %s131 = sphi 0, %s115
    %s137 = sphi 0, %s139
    %s140 = sphi 0, %s137
    %s141 = sphi 0, %s140
    %s157 = sphi 0, %s141
    %s165 = sphi 0, %s167
    %s168 = sphi 0, %s165
    %s169 = sphi 0, %s168
    %s185 = sphi 0, %s169
  $region4: #{a_call__.1} parent=0 // loop_header_branch
    %14 = sbr.rel (%p12) target = $region8
  $region5: #{a_call__.1} parent=0 // loop_body
    %s16 = ssub.s32 %s11, 1
    %s17 = ssub.s32 %s11, 2
    %s24 = sadd.s32 1, %s19
    %p25 = scmp.ge.s32.totalorder %s24, 1
    %s26 = scalar_select %p25, 0, %s24
    %s27 = sadd.s32 1, %s18
    %s28 = scalar_select %p25, %s27, %s18
    %p29 = scmp.ge.s32.totalorder %s28, 2
    %s30 = scalar_select %p29, 0, %s28
    %s31 = ssub.s32 %s18, %s30
    %p32 = scmp.eq.s32.totalorder %s31, 0
    %s34 = sadd.s32 %s33, 1
    %s35 = scalar_select %p32, %s33, %s34
    %p38 = pneg %p32
    %p39 = scmp.eq.s32.totalorder %s11, 1
    %p40 = por %p38, %p39
    %p41 = scmp.ne.s32.totalorder %s33, %s36
    %p42 = scmp.eq.s32.totalorder %s11, 0
    %p43 = por %p41, %p42
    %p44 = scmp.ne.s32.totalorder %s33, %s36
    %p45 = scmp.eq.s32.totalorder %s16, 1
    %p46 = por %p44, %p45
    %p47 = scmp.ne.s32.totalorder %s36, %s37
    %p48 = scmp.eq.s32.totalorder %s16, 0
    %p49 = por %p47, %p48
    %p50 = scmp.ne.s32.totalorder %s36, %s37
    %p51 = scmp.eq.s32.totalorder %s17, 1
    %p52 = por %p50, %p51
    %p54 = scmp.ne.s32.totalorder %s37, %s53
    %p55 = scmp.eq.s32.totalorder %s17, 0
    %p56 = por %p54, %p55
    %s57 = ssub.s32 %s19, %s26
    %p58 = scmp.eq.s32.totalorder %s57, 0
    %s60 = sadd.s32 %s59, 1
    %s61 = scalar_select %p58, %s59, %s60
    %p64 = pneg %p58
    %p65 = scmp.eq.s32.totalorder %s11, 1
    %p66 = por %p64, %p65
    %p67 = scmp.ne.s32.totalorder %s59, %s62
    %p68 = scmp.eq.s32.totalorder %s11, 0
    %p69 = por %p67, %p68
    %p70 = scmp.ne.s32.totalorder %s59, %s62
    %p71 = scmp.eq.s32.totalorder %s16, 1
    %p72 = por %p70, %p71
    %p73 = scmp.ne.s32.totalorder %s62, %s63
    %p74 = scmp.eq.s32.totalorder %s16, 0
    %p75 = por %p73, %p74
    %p76 = scmp.ne.s32.totalorder %s62, %s63
    %p77 = scmp.eq.s32.totalorder %s17, 1
    %p78 = por %p76, %p77
    %p80 = scmp.ne.s32.totalorder %s63, %s79
    %p81 = scmp.eq.s32.totalorder %s17, 0
    %p82 = por %p80, %p81
    %s83 = ssub.s32 %s19, %s26
    %p84 = scmp.eq.s32.totalorder %s83, 0
    %s86 = sadd.s32 %s85, 1
    %s87 = scalar_select %p84, %s85, %s86
    %p90 = pneg %p84
    %p91 = scmp.eq.s32.totalorder %s11, 1
    %p92 = por %p90, %p91
    %p93 = scmp.ne.s32.totalorder %s85, %s88
    %p94 = scmp.eq.s32.totalorder %s11, 0
    %p95 = por %p93, %p94
    %p96 = scmp.ne.s32.totalorder %s85, %s88
    %p97 = scmp.eq.s32.totalorder %s16, 1
    %p98 = por %p96, %p97
    %p99 = scmp.ne.s32.totalorder %s88, %s89
    %p100 = scmp.eq.s32.totalorder %s16, 0
    %p101 = por %p99, %p100
    %p102 = scmp.ne.s32.totalorder %s88, %s89
    %p103 = scmp.eq.s32.totalorder %s17, 1
    %p104 = por %p102, %p103
    %p106 = scmp.ne.s32.totalorder %s89, %s105
    %p107 = scmp.eq.s32.totalorder %s17, 0
    %p108 = por %p106, %p107
    %s109 = ssub.s32 %s19, %s26
    %p110 = scmp.eq.s32.totalorder %s109, 0
    %s112 = sadd.s32 %s111, 1
    %s113 = scalar_select %p110, %s111, %s112
    %p116 = pneg %p110
    %p117 = scmp.eq.s32.totalorder %s11, 1
    %p118 = por %p116, %p117
    %p119 = scmp.ne.s32.totalorder %s111, %s114
    %p120 = scmp.eq.s32.totalorder %s11, 0
    %p121 = por %p119, %p120
    %p122 = scmp.ne.s32.totalorder %s111, %s114
    %p123 = scmp.eq.s32.totalorder %s16, 1
    %p124 = por %p122, %p123
    %p125 = scmp.ne.s32.totalorder %s114, %s115
    %p126 = scmp.eq.s32.totalorder %s16, 0
    %p127 = por %p125, %p126
    %p128 = scmp.ne.s32.totalorder %s114, %s115
    %p129 = scmp.eq.s32.totalorder %s17, 1
    %p130 = por %p128, %p129
    %p132 = scmp.ne.s32.totalorder %s115, %s131
    %p133 = scmp.eq.s32.totalorder %s17, 0
    %p134 = por %p132, %p133
    %s135 = ssub.s32 %s19, %s26
    %p136 = scmp.eq.s32.totalorder %s135, 0
    %s138 = sadd.s32 %s137, 1
    %s139 = scalar_select %p136, %s137, %s138
    %p142 = pneg %p136
    %p143 = scmp.eq.s32.totalorder %s11, 1
    %p144 = por %p142, %p143
    %p145 = scmp.ne.s32.totalorder %s137, %s140
    %p146 = scmp.eq.s32.totalorder %s11, 0
    %p147 = por %p145, %p146
    %p148 = scmp.ne.s32.totalorder %s137, %s140
    %p149 = scmp.eq.s32.totalorder %s16, 1
    %p150 = por %p148, %p149
    %p151 = scmp.ne.s32.totalorder %s140, %s141
    %p152 = scmp.eq.s32.totalorder %s16, 0
    %p153 = por %p151, %p152
    %p154 = scmp.ne.s32.totalorder %s140, %s141
    %p155 = scmp.eq.s32.totalorder %s17, 1
    %p156 = por %p154, %p155
    %p158 = scmp.ne.s32.totalorder %s141, %s157
    %p159 = scmp.eq.s32.totalorder %s17, 0
    %p160 = por %p158, %p159
    %s161 = ssub.s32 %s18, %s30
    %s162 = ssub.s32 %s19, %s26
    %s163 = sor.u32 %s161, %s162
    %p164 = scmp.eq.s32.totalorder %s163, 0
    %s166 = sadd.s32 %s165, 1
    %s167 = scalar_select %p164, %s165, %s166
    %p170 = pneg %p164
    %p171 = scmp.eq.s32.totalorder %s11, 1
    %p172 = por %p170, %p171
    %p173 = scmp.ne.s32.totalorder %s165, %s168
    %p174 = scmp.eq.s32.totalorder %s11, 0
    %p175 = por %p173, %p174
    %p176 = scmp.ne.s32.totalorder %s165, %s168
    %p177 = scmp.eq.s32.totalorder %s16, 1
    %p178 = por %p176, %p177
    %p179 = scmp.ne.s32.totalorder %s168, %s169
    %p180 = scmp.eq.s32.totalorder %s16, 0
    %p181 = por %p179, %p180
    %p182 = scmp.ne.s32.totalorder %s168, %s169
    %p183 = scmp.eq.s32.totalorder %s17, 1
    %p184 = por %p182, %p183
    %p186 = scmp.ne.s32.totalorder %s169, %s185
    %p187 = scmp.eq.s32.totalorder %s17, 0
    %p188 = por %p186, %p187
    %p189 = scmp.le.s32.totalorder 1, %s11
    %p190 = scmp.lt.s32.totalorder %s11, 3
    %p191 = pnand %p189, %p190
    %p192 = pneg %p191
    // Predicated region
    $region9: #{a_call__.1} parent=5 // pred_check
      _
    $region10: #{a_call__.1} parent=5 // pred_check_branch
      %194 = sbr.rel (%p191) target = $region12
    $region11: #{a_call__.1} parent=5 // pred_region
      %s195 = ssub.s32 %s11, 1
      // Predicated region
      $region13: #{a_call__.1} parent=11 // pred_check
        %p196 = pneg %p75
      $region14: #{a_call__.1} parent=11 // pred_check_branch
        %198 = sbr.rel (%p196) target = $region16
      $region15: #{a_call__.1} parent=11 // pred_region
        %p199 = scmp.lt.s32.totalorder %s21, 0
        %s200 = scalar_select %p199, %s21, 0
        %s201 = smul.addr %s200, 4
        %s202 = scalar_lea.vmem %s1, %s201
      $region16: #{a_call__.1} parent=11 // pred_fallthru
        _
      // Predicated region
      $region17: #{a_call__.1} parent=11 // pred_check
        %p203 = pneg %p101
      $region18: #{a_call__.1} parent=11 // pred_check_branch
        %205 = sbr.rel (%p203) target = $region20
      $region19: #{a_call__.1} parent=11 // pred_region
        %p206 = scmp.lt.s32.totalorder %s21, 0
        %s207 = scalar_select %p206, %s21, 0
        %s208 = smul.addr %s207, 4
        %s209 = scalar_lea.vmem %s2, %s208
      $region20: #{a_call__.1} parent=11 // pred_fallthru
        _
      // Predicated region
      $region21: #{a_call__.1} parent=11 // pred_check
        %p210 = pneg %p127
      $region22: #{a_call__.1} parent=11 // pred_check_branch
        %212 = sbr.rel (%p210) target = $region24
      $region23: #{a_call__.1} parent=11 // pred_region
        %p213 = scmp.lt.s32.totalorder %s21, 0
        %s214 = scalar_select %p213, %s21, 0
        %s215 = smul.addr %s214, 4
        %s216 = scalar_lea.vmem %s3, %s215
      $region24: #{a_call__.1} parent=11 // pred_fallthru
        _
      // Predicated region
      $region25: #{a_call__.1} parent=11 // pred_check
        %p217 = pneg %p153
      $region26: #{a_call__.1} parent=11 // pred_check_branch
        %219 = sbr.rel (%p217) target = $region28
      $region27: #{a_call__.1} parent=11 // pred_region
        %p220 = scmp.lt.s32.totalorder %s21, 0
        %s221 = scalar_select %p220, %s21, 0
        %s222 = scalar_lea.vmem %s4, %s221
      $region28: #{a_call__.1} parent=11 // pred_fallthru
        _
    $region12: #{a_call__.1} parent=5 // pred_fallthru
      _
    %p223 = scmp.lt.s32.totalorder %s11, 2
    // Predicated region
    $region29: #{a_call__.1} parent=5 // pred_check
      %p224 = pneg %p223
    $region30: #{a_call__.1} parent=5 // pred_check_branch
      %226 = sbr.rel (%p224) target = $region32
    $region31: #{a_call__.1} parent=5 // pred_region
      // Predicated region
      $region33: #{a_call__.1} parent=31 // pred_check
        %p227 = pneg %p43
      $region34: #{a_call__.1} parent=31 // pred_check_branch
        %229 = sbr.rel (%p227) target = $region36
      $region35: #{a_call__.1} parent=31 // pred_region
        %p230 = scmp.lt.s32.totalorder %s18, 1
        %s231 = scalar_select %p230, %s18, 1
        %s232 = smul.addr %s231, 8
        %s233 = smul.addr %s232, 4
        %s234 = scalar_lea.vmem %s0, %s233
      $region36: #{a_call__.1} parent=31 // pred_fallthru
        _
    $region32: #{a_call__.1} parent=5 // pred_fallthru
      _
    %p235 = scmp.le.s32.totalorder 1, %s11
    %p236 = scmp.lt.s32.totalorder %s11, 3
    %p237 = pnand %p235, %p236
    %p238 = pneg %p237
    // Predicated region
    $region37: #{a_call__.1} parent=5 // pred_check
      _
    $region38: #{a_call__.1} parent=5 // pred_check_branch
      %240 = sbr.rel (%p237) target = $region40
    $region39: #{a_call__.1} parent=5 // pred_region
      %s241 = ssub.s32 %s11, 1
      %p242 = scmp.lt.s32.totalorder %s20, 1
      %s243 = scalar_select %p242, %s20, 1
      %s244 = smul.addr %s243, 8
      %s245 = smul.addr %s244, 4
      %s246 = scalar_lea.vmem %s0, %s245
      %p247 = pneg %p49
      %p248 = pneg %p46
      %p249 = scmp.lt.s32.totalorder %s21, 0
      %s250 = scalar_select %p249, %s21, 0
      %s251 = smul.addr %s250, 4
      %s252 = scalar_lea.vmem %s1, %s251
      %p253 = pneg %p75
      %p254 = pneg %p72
      %p255 = scmp.lt.s32.totalorder %s21, 0
      %s256 = scalar_select %p255, %s21, 0
      %s257 = smul.addr %s256, 4
      %s258 = scalar_lea.vmem %s2, %s257
      %p259 = pneg %p101
      %p260 = pneg %p98
      %p261 = scmp.lt.s32.totalorder %s21, 0
      %s262 = scalar_select %p261, %s21, 0
      %s263 = smul.addr %s262, 4
      %s264 = scalar_lea.vmem %s3, %s263
      %p265 = pneg %p127
      %p266 = pneg %p124
      %p267 = scmp.lt.s32.totalorder %s21, 0
      %s268 = scalar_select %p267, %s21, 0
      %s269 = scalar_lea.vmem %s4, %s268
      %p270 = pneg %p153
      %p271 = pneg %p150
      %p272 = pneg %p181
      %p273 = pneg %p178
      %p274 = scmp.lt.s32.totalorder %s20, 1
      %s275 = scalar_select %p274, %s20, 1
      %p276 = scmp.lt.s32.totalorder %s21, 0
      %s277 = scalar_select %p276, %s21, 0
      %s278 = smul.addr %s275, 8
      %s279 = sadd.s32 %s277, %s278
      %s280 = smul.addr %s279, 8
      %s281 = scalar_lea.vmem %s5, %s280
      %p282 = scmp.lt.s32.totalorder %s20, 1
      %s283 = scalar_select %p282, %s20, 1
      %s284 = smul.addr %s283, 8
      %s285 = smul.addr %s284, 4
      %s286 = scalar_lea.vmem %s0, %s285
      %p287 = scmp.lt.s32.totalorder %s21, 0
      %s288 = scalar_select %p287, %s21, 0
      %s289 = smul.addr %s288, 4
      %s290 = scalar_lea.vmem %s1, %s289
      %p291 = scmp.lt.s32.totalorder %s21, 0
      %s292 = scalar_select %p291, %s21, 0
      %s293 = smul.addr %s292, 4
      %s294 = scalar_lea.vmem %s2, %s293
      %p295 = scmp.lt.s32.totalorder %s21, 0
      %s296 = scalar_select %p295, %s21, 0
      %s297 = smul.addr %s296, 4
      %s298 = scalar_lea.vmem %s3, %s297
      %p299 = scmp.lt.s32.totalorder %s21, 0
      %s300 = scalar_select %p299, %s21, 0
      %s301 = scalar_lea.vmem %s4, %s300
      %p302 = scmp.lt.s32.totalorder %s20, 1
      %s303 = scalar_select %p302, %s20, 1
      %p304 = scmp.lt.s32.totalorder %s21, 0
      %s305 = scalar_select %p304, %s21, 0
      %s306 = smul.addr %s303, 8
      %s307 = sadd.s32 %s305, %s306
      %s308 = smul.addr %s307, 8
      %s309 = scalar_lea.vmem %s5, %s308
      %vm311 = vcmask 125952
      %312 = vst.msk [vmem:[#allocation2] sm:$0xf] %vm311, 0
      %vm313 = vcmask 122880
      %314 = vst.msk [vmem:[#allocation2 + $0x4] sm:$0x1] %vm313, 0
      %s315 = scalar_lea.vmem [#allocation2], 72
      %316 = vst.msk [vmem:[%s315] sm:$0xf] %vm311, 0
      %317 = vst.msk [vmem:[%s315 + $0x4] sm:$0x1] %vm313, 0
      %vm318 = vcmask 122880
      %vm319 = vsmask.f32 256
      %vm320 = vmand %vm318, %vm319
      %v321 = vld [vmem:[#allocation2] sm:$0x1]
      %v322 = vsel %vm320, 0, %v321
      %323 = vst [vmem:[#allocation2] sm:$0x1] %v322
      %v324 = vld [vmem:[#allocation2 + $0x8] sm:$0x1]
      %v325 = vsel %vm320, 0, %v324
      %326 = vst [vmem:[#allocation2 + $0x8] sm:$0x1] %v325
      %v327 = vld [vmem:[#allocation2 + $0x10] sm:$0x1]
      %v328 = vsel %vm320, 0, %v327
      %329 = vst [vmem:[#allocation2 + $0x10] sm:$0x1] %v328
      %v330 = vld [vmem:[#allocation2 + $0x18] sm:$0x1]
      %v331 = vsel %vm320, 0, %v330
      %332 = vst [vmem:[#allocation2 + $0x18] sm:$0x1] %v331
      %v333 = vld [vmem:[#allocation2 + $0x20] sm:$0x1]
      %v334 = vsel %vm320, 0, %v333
      %335 = vst [vmem:[#allocation2 + $0x20] sm:$0x1] %v334
      %v336 = vld [vmem:[#allocation2 + $0x28] sm:$0x1]
      %v337 = vsel %vm320, 0, %v336
      %338 = vst [vmem:[#allocation2 + $0x28] sm:$0x1] %v337
      %v339 = vld [vmem:[#allocation2 + $0x30] sm:$0x1]
      %v340 = vsel %vm320, 0, %v339
      %341 = vst [vmem:[#allocation2 + $0x30] sm:$0x1] %v340
      %v342 = vld [vmem:[#allocation2 + $0x38] sm:$0x1]
      %v343 = vsel %vm320, 0, %v342
      %344 = vst [vmem:[#allocation2 + $0x38] sm:$0x1] %v343
      %v345 = vld [vmem:[#allocation2 + $0x40] sm:$0x1]
      %v346 = vsel %vm320, 0, %v345
      %347 = vst [vmem:[#allocation2 + $0x40] sm:$0x1] %v346
      %v348 = vld [vmem:[#allocation2 + $0x48] sm:$0x1]
      %v349 = vsel %vm320, 0, %v348
      %350 = vst [vmem:[#allocation2 + $0x48] sm:$0x1] %v349
      %vm351 = vsmask.f32 7938
      %vm352 = vmand %vm318, %vm351
      %v353 = vld [vmem:[#allocation2 + $0x4] sm:$0x1]
      %v354 = vsel %vm352, 0, %v353
      %355 = vst [vmem:[#allocation2 + $0x4] sm:$0x1] %v354
      %v356 = vld [vmem:[#allocation2 + $0xc] sm:$0x1]
      %v357 = vsel %vm352, 0, %v356
      %358 = vst [vmem:[#allocation2 + $0xc] sm:$0x1] %v357
      %v359 = vld [vmem:[#allocation2 + $0x14] sm:$0x1]
      %v360 = vsel %vm352, 0, %v359
      %361 = vst [vmem:[#allocation2 + $0x14] sm:$0x1] %v360
      %v362 = vld [vmem:[#allocation2 + $0x1c] sm:$0x1]
      %v363 = vsel %vm352, 0, %v362
      %364 = vst [vmem:[#allocation2 + $0x1c] sm:$0x1] %v363
      %v365 = vld [vmem:[#allocation2 + $0x24] sm:$0x1]
      %v366 = vsel %vm352, 0, %v365
      %367 = vst [vmem:[#allocation2 + $0x24] sm:$0x1] %v366
      %v368 = vld [vmem:[#allocation2 + $0x2c] sm:$0x1]
      %v369 = vsel %vm352, 0, %v368
      %370 = vst [vmem:[#allocation2 + $0x2c] sm:$0x1] %v369
      %v371 = vld [vmem:[#allocation2 + $0x34] sm:$0x1]
      %v372 = vsel %vm352, 0, %v371
      %373 = vst [vmem:[#allocation2 + $0x34] sm:$0x1] %v372
      %v374 = vld [vmem:[#allocation2 + $0x3c] sm:$0x1]
      %v375 = vsel %vm352, 0, %v374
      %376 = vst [vmem:[#allocation2 + $0x3c] sm:$0x1] %v375
      %v377 = vld [vmem:[#allocation2 + $0x44] sm:$0x1]
      %v378 = vsel %vm352, 0, %v377
      %379 = vst [vmem:[#allocation2 + $0x44] sm:$0x1] %v378
      %v380 = vld [vmem:[#allocation2 + $0x4c] sm:$0x1]
      %v381 = vsel %vm352, 0, %v380
      %382 = vst [vmem:[#allocation2 + $0x4c] sm:$0x1] %v381
      %v383 = vld [vmem:[%s286] sm:$0xf]
      %v384 = vld [vmem:[%s286 + $0x4] sm:$0xf]
      %v385 = vld [vmem:[%s286 + $0x8] sm:$0xf]
      %v386 = vld [vmem:[%s286 + $0xc] sm:$0xf]
      %v387 = vld [vmem:[%s286 + $0x10] sm:$0xf]
      %v388 = vld [vmem:[%s286 + $0x14] sm:$0xf]
      %v389 = vld [vmem:[%s286 + $0x18] sm:$0xf]
      %v390 = vld [vmem:[%s286 + $0x1c] sm:$0xf]
      %v392 = vshrl.u32 %v383, 16
      %v394 = vrot.slane %v392, 7
      %v395 = vshll.u32 %v383, 16
      %v397 = vor.u32 %v394, %v395
      %v398 = vrot.slane %v394, 4
      %v400 = vshrl.u32 %v384, 16
      %v402 = vrot.slane %v400, 7
      %v403 = vshll.u32 %v384, 16
      %v405 = vor.u32 %v402, %v403
      %v406 = vrot.slane %v402, 4
      %v408 = vshrl.u32 %v385, 16
      %v410 = vrot.slane %v408, 7
      %v411 = vshll.u32 %v385, 16
      %v413 = vor.u32 %v410, %v411
      %v414 = vrot.slane %v410, 4
      %v416 = vshrl.u32 %v386, 16
      %v418 = vrot.slane %v416, 7
      %v419 = vshll.u32 %v386, 16
      %v421 = vor.u32 %v418, %v419
      %v422 = vrot.slane %v418, 4
      %v424 = vshrl.u32 %v387, 16
      %v426 = vrot.slane %v424, 7
      %v427 = vshll.u32 %v387, 16
      %v429 = vor.u32 %v426, %v427
      %v430 = vrot.slane %v426, 4
      %v432 = vshrl.u32 %v388, 16
      %v434 = vrot.slane %v432, 7
      %v435 = vshll.u32 %v388, 16
      %v437 = vor.u32 %v434, %v435
      %v438 = vrot.slane %v434, 4
      %v440 = vshrl.u32 %v389, 16
      %v442 = vrot.slane %v440, 7
      %v443 = vshll.u32 %v389, 16
      %v445 = vor.u32 %v442, %v443
      %v446 = vrot.slane %v442, 4
      %v448 = vshrl.u32 %v390, 16
      %v450 = vrot.slane %v448, 7
      %v451 = vshll.u32 %v390, 16
      %v453 = vor.u32 %v450, %v451
      %v454 = vrot.slane %v450, 4
      %s471 = scalar_lea.vmem [#allocation2], 8
      %vm472 = vcmask 125952
      %vm473 = vmand %vm472, %vm351
      %v474 = vld [vmem:[%s471] sm:$0xf]
      %v475 = vsel %vm473, %v397, %v474
      %476 = vst [vmem:[%s471] sm:$0xf] %v475
      %v477 = vld [vmem:[%s471 + $0x4] sm:$0x1]
      %v478 = vsel %vm320, %v398, %v477
      %479 = vst [vmem:[%s471 + $0x4] sm:$0x1] %v478
      %v480 = vld [vmem:[%s471 + $0x8] sm:$0xf]
      %v481 = vsel %vm473, %v405, %v480
      %482 = vst [vmem:[%s471 + $0x8] sm:$0xf] %v481
      %v483 = vld [vmem:[%s471 + $0xc] sm:$0x1]
      %v484 = vsel %vm320, %v406, %v483
      %485 = vst [vmem:[%s471 + $0xc] sm:$0x1] %v484
      %v486 = vld [vmem:[%s471 + $0x10] sm:$0xf]
      %v487 = vsel %vm473, %v413, %v486
      %488 = vst [vmem:[%s471 + $0x10] sm:$0xf] %v487
      %v489 = vld [vmem:[%s471 + $0x14] sm:$0x1]
      %v490 = vsel %vm320, %v414, %v489
      %491 = vst [vmem:[%s471 + $0x14] sm:$0x1] %v490
      %v492 = vld [vmem:[%s471 + $0x18] sm:$0xf]
      %v493 = vsel %vm473, %v421, %v492
      %494 = vst [vmem:[%s471 + $0x18] sm:$0xf] %v493
      %v495 = vld [vmem:[%s471 + $0x1c] sm:$0x1]
      %v496 = vsel %vm320, %v422, %v495
      %497 = vst [vmem:[%s471 + $0x1c] sm:$0x1] %v496
      %v498 = vld [vmem:[%s471 + $0x20] sm:$0xf]
      %v499 = vsel %vm473, %v429, %v498
      %500 = vst [vmem:[%s471 + $0x20] sm:$0xf] %v499
      %v501 = vld [vmem:[%s471 + $0x24] sm:$0x1]
      %v502 = vsel %vm320, %v430, %v501
      %503 = vst [vmem:[%s471 + $0x24] sm:$0x1] %v502
      %v504 = vld [vmem:[%s471 + $0x28] sm:$0xf]
      %v505 = vsel %vm473, %v437, %v504
      %506 = vst [vmem:[%s471 + $0x28] sm:$0xf] %v505
      %v507 = vld [vmem:[%s471 + $0x2c] sm:$0x1]
      %v508 = vsel %vm320, %v438, %v507
      %509 = vst [vmem:[%s471 + $0x2c] sm:$0x1] %v508
      %v510 = vld [vmem:[%s471 + $0x30] sm:$0xf]
      %v511 = vsel %vm473, %v445, %v510
      %512 = vst [vmem:[%s471 + $0x30] sm:$0xf] %v511
      %v513 = vld [vmem:[%s471 + $0x34] sm:$0x1]
      %v514 = vsel %vm320, %v446, %v513
      %515 = vst [vmem:[%s471 + $0x34] sm:$0x1] %v514
      %v516 = vld [vmem:[%s471 + $0x38] sm:$0xf]
      %v517 = vsel %vm473, %v453, %v516
      %518 = vst [vmem:[%s471 + $0x38] sm:$0xf] %v517
      %v519 = vld [vmem:[%s471 + $0x3c] sm:$0x1]
      %v520 = vsel %vm320, %v454, %v519
      %521 = vst [vmem:[%s471 + $0x3c] sm:$0x1] %v520
      %v522 = vld [vmem:[%s471] sm:$0xf]
      %v523 = vld [vmem:[%s471 + $0x8] sm:$0xf]
      %v524 = vld [vmem:[%s471 + $0x10] sm:$0xf]
      %v525 = vld [vmem:[%s471 + $0x18] sm:$0xf]
      %v526 = vld [vmem:[%s471 + $0x20] sm:$0xf]
      %v527 = vld [vmem:[%s471 + $0x28] sm:$0xf]
      %v528 = vld [vmem:[%s471 + $0x30] sm:$0xf]
      %v529 = vld [vmem:[%s471 + $0x38] sm:$0xf]
      %v530 = vld [vmem:[%s471 + $0x4] sm:$0x1]
      %v531 = vld [vmem:[%s471 + $0xc] sm:$0x1]
      %v532 = vld [vmem:[%s471 + $0x14] sm:$0x1]
      %v533 = vld [vmem:[%s471 + $0x1c] sm:$0x1]
      %v534 = vld [vmem:[%s471 + $0x24] sm:$0x1]
      %v535 = vld [vmem:[%s471 + $0x2c] sm:$0x1]
      %v536 = vld [vmem:[%s471 + $0x34] sm:$0x1]
      %v537 = vld [vmem:[%s471 + $0x3c] sm:$0x1]
      %v538 = vld [vmem:[%s471] sm:$0xe]
      %v539 = vld [vmem:[%s471 + $0x8] sm:$0xe]
      %v540 = vld [vmem:[%s471 + $0x10] sm:$0xe]
      %v541 = vld [vmem:[%s471 + $0x18] sm:$0xe]
      %v542 = vld [vmem:[%s471 + $0x20] sm:$0xe]
      %v543 = vld [vmem:[%s471 + $0x28] sm:$0xe]
      %v544 = vld [vmem:[%s471 + $0x30] sm:$0xe]
      %v545 = vld [vmem:[%s471 + $0x38] sm:$0xe]
      %v562 = vunpack.c.l.b16 %v522
      %v563 = vunpack.c.l.b16 %v530
      %v564 = vunpack.c.l.b16 %v523
      %v565 = vunpack.c.l.b16 %v531
      %v566 = vunpack.c.l.b16 %v524
      %v567 = vunpack.c.l.b16 %v532
      %v568 = vunpack.c.l.b16 %v525
      %v569 = vunpack.c.l.b16 %v533
      %v570 = vunpack.c.l.b16 %v526
      %v571 = vunpack.c.l.b16 %v534
      %v572 = vunpack.c.l.b16 %v527
      %v573 = vunpack.c.l.b16 %v535
      %v574 = vunpack.c.l.b16 %v528
      %v575 = vunpack.c.l.b16 %v536
      %v576 = vunpack.c.l.b16 %v529
      %v577 = vunpack.c.l.b16 %v537
      %v578 = vpack.c.b16 %v563, %v562
      %v579 = vpack.c.b16 %v565, %v564
      %v580 = vpack.c.b16 %v567, %v566
      %v581 = vpack.c.b16 %v569, %v568
      %v582 = vpack.c.b16 %v571, %v570
      %v583 = vpack.c.b16 %v573, %v572
      %v584 = vpack.c.b16 %v575, %v574
      %v585 = vpack.c.b16 %v577, %v576
      %v587 = vshrl.u32 %v578, 16
      %v589 = vshll.u32 %v578, 16
      %v591 = vrot.slane %v589, 1
      %v592 = vor.u32 %v587, %v591
      %v594 = vshrl.u32 %v579, 16
      %v596 = vshll.u32 %v579, 16
      %v598 = vrot.slane %v596, 1
      %v599 = vor.u32 %v594, %v598
      %v601 = vshrl.u32 %v580, 16
      %v603 = vshll.u32 %v580, 16
      %v605 = vrot.slane %v603, 1
      %v606 = vor.u32 %v601, %v605
      %v608 = vshrl.u32 %v581, 16
      %v610 = vshll.u32 %v581, 16
      %v612 = vrot.slane %v610, 1
      %v613 = vor.u32 %v608, %v612
      %v615 = vshrl.u32 %v582, 16
      %v617 = vshll.u32 %v582, 16
      %v619 = vrot.slane %v617, 1
      %v620 = vor.u32 %v615, %v619
      %v622 = vshrl.u32 %v583, 16
      %v624 = vshll.u32 %v583, 16
      %v626 = vrot.slane %v624, 1
      %v627 = vor.u32 %v622, %v626
      %v629 = vshrl.u32 %v584, 16
      %v631 = vshll.u32 %v584, 16
      %v633 = vrot.slane %v631, 1
      %v634 = vor.u32 %v629, %v633
      %v636 = vshrl.u32 %v585, 16
      %v638 = vshll.u32 %v585, 16
      %v640 = vrot.slane %v638, 1
      %v641 = vor.u32 %v636, %v640
      %642 = vrot.lane.b32.xlu0 %v592, 16
      %v643 = vpop.permute.xlu0 %642
      %644 = vrot.lane.b32.xlu0 %v599, 16
      %v645 = vpop.permute.xlu0 %644
      %646 = vrot.lane.b32.xlu0 %v606, 16
      %v647 = vpop.permute.xlu0 %646
      %648 = vrot.lane.b32.xlu0 %v613, 16
      %v649 = vpop.permute.xlu0 %648
      %650 = vrot.lane.b32.xlu0 %v620, 16
      %v651 = vpop.permute.xlu0 %650
      %652 = vrot.lane.b32.xlu0 %v627, 16
      %v653 = vpop.permute.xlu0 %652
      %654 = vrot.lane.b32.xlu0 %v634, 16
      %v655 = vpop.permute.xlu0 %654
      %656 = vrot.lane.b32.xlu0 %v641, 16
      %v657 = vpop.permute.xlu0 %656
      %v666 = vunpack.c.l.b16 %v538
      %v667 = vunpack.c.l.b16 %v539
      %v668 = vunpack.c.l.b16 %v540
      %v669 = vunpack.c.l.b16 %v541
      %v670 = vunpack.c.l.b16 %v542
      %v671 = vunpack.c.l.b16 %v543
      %v672 = vunpack.c.l.b16 %v544
      %v673 = vunpack.c.l.b16 %v545
      %v674 = vpack.c.b16 %v563, %v666
      %v675 = vpack.c.b16 %v565, %v667
      %v676 = vpack.c.b16 %v567, %v668
      %v677 = vpack.c.b16 %v569, %v669
      %v678 = vpack.c.b16 %v571, %v670
      %v679 = vpack.c.b16 %v573, %v671
      %v680 = vpack.c.b16 %v575, %v672
      %v681 = vpack.c.b16 %v577, %v673
      %v682 = vrot.slane %v674, 1
      %v683 = vrot.slane %v675, 1
      %v684 = vrot.slane %v676, 1
      %v685 = vrot.slane %v677, 1
      %v686 = vrot.slane %v678, 1
      %v687 = vrot.slane %v679, 1
      %v688 = vrot.slane %v680, 1
      %v689 = vrot.slane %v681, 1
      %690 = vrot.lane.b32.xlu0 %v682, 32
      %v691 = vpop.permute.xlu0 %690
      %692 = vrot.lane.b32.xlu0 %v683, 32
      %v693 = vpop.permute.xlu0 %692
      %694 = vrot.lane.b32.xlu0 %v684, 32
      %v695 = vpop.permute.xlu0 %694
      %696 = vrot.lane.b32.xlu0 %v685, 32
      %v697 = vpop.permute.xlu0 %696
      %698 = vrot.lane.b32.xlu0 %v686, 32
      %v699 = vpop.permute.xlu0 %698
      %700 = vrot.lane.b32.xlu0 %v687, 32
      %v701 = vpop.permute.xlu0 %700
      %702 = vrot.lane.b32.xlu0 %v688, 32
      %v703 = vpop.permute.xlu0 %702
      %704 = vrot.lane.b32.xlu0 %v689, 32
      %v705 = vpop.permute.xlu0 %704
      %vm706 = vcmask 130048
      %v709 = vsel %vm706, %v522, %v643
      %v712 = vsel %vm706, %v523, %v645
      %v715 = vsel %vm706, %v524, %v647
      %v718 = vsel %vm706, %v525, %v649
      %v721 = vsel %vm706, %v526, %v651
      %v724 = vsel %vm706, %v527, %v653
      %v727 = vsel %vm706, %v528, %v655
      %v730 = vsel %vm706, %v529, %v657
      %vm731 = vcmask 261120
      %v733 = vsel %vm731, %v709, %v691
      %v735 = vsel %vm731, %v712, %v693
      %v737 = vsel %vm731, %v715, %v695
      %v739 = vsel %vm731, %v718, %v697
      %v741 = vsel %vm731, %v721, %v699
      %v743 = vsel %vm731, %v724, %v701
      %v745 = vsel %vm731, %v727, %v703
      %v747 = vsel %vm731, %v730, %v705
      %v748 = vld [vmem:[%s290] sm:$0xf]
      %v749 = vld [vmem:[%s290 + $0x4] sm:$0xf]
      %v750 = vld [vmem:[%s290 + $0x8] sm:$0xf]
      %v751 = vld [vmem:[%s290 + $0xc] sm:$0xf]
      %v752 = vld [vmem:[%s290 + $0x10] sm:$0xf]
      %v753 = vld [vmem:[%s290 + $0x14] sm:$0xf]
      %v762 = vunpack.c.l.b16 %v733
      %v763 = vunpack.c.l.b16 %v735
      %v764 = vunpack.c.l.b16 %v737
      %v765 = vunpack.c.l.b16 %v739
      %v766 = vunpack.c.l.b16 %v741
      %v767 = vunpack.c.l.b16 %v743
      %v768 = vunpack.c.l.b16 %v745
      %v769 = vunpack.c.l.b16 %v747
      %v770 = vpack.c.b16 %v763, %v762
      %v771 = vpack.c.b16 %v765, %v764
      %v772 = vpack.c.b16 %v767, %v766
      %v773 = vpack.c.b16 %v769, %v768
      %v780 = vunpack.c.l.b16 %v748
      %v781 = vunpack.c.l.b16 %v749
      %v782 = vunpack.c.l.b16 %v750
      %v783 = vunpack.c.l.b16 %v751
      %v784 = vunpack.c.l.b16 %v752
      %v785 = vunpack.c.l.b16 %v753
      %v786 = vpack.c.b16 %v781, %v780
      %v787 = vpack.c.b16 %v783, %v782
      %v788 = vpack.c.b16 %v785, %v784
      %vm792 = vcmask 392192
      %v794 = vsel %vm792, %v770, 0
      %v797 = vsel %vm792, %v771, 0
      %v800 = vsel %vm792, %v772, 0
      %v803 = vsel %vm792, %v773, 0
      %805 = vmatpush.bf16.msra.mxu0 0
      %806 = vmatpush.bf16.msra.mxu0 0
      %807 = vmatpush.bf16.msra.mxu0 0
      %808 = vmatpush.bf16.msra.mxu0 0
      %809 = vmatpush.bf16.msra.mxu0 0
      %810 = vmatpush.bf16.msra.mxu0 %v788
      %811 = vmatpush.bf16.msra.mxu0 %v787
      %812 = vmatpush.bf16.msra.mxu0 %v786
      %813 = vmatmul.bf16.gmra.mxu0 %v794
      %v814 = vpop.f32.mrf.mxu0
      %v815 = vadd.f32 0.0, %v814
      %v816 = vpop.f32.mrf.mxu0
      %v817 = vadd.f32 0.0, %v816
      %818 = vmatmul.bf16.gmra.mxu0 %v797
      %v819 = vpop.f32.mrf.mxu0
      %v820 = vadd.f32 0.0, %v819
      %v821 = vpop.f32.mrf.mxu0
      %v822 = vadd.f32 0.0, %v821
      %823 = vmatmul.bf16.gmra.mxu0 %v800
      %v824 = vpop.f32.mrf.mxu0
      %v825 = vadd.f32 0.0, %v824
      %v826 = vpop.f32.mrf.mxu0
      %v827 = vadd.f32 0.0, %v826
      %828 = vmatmul.bf16.gmra.mxu0 %v803
      %v829 = vpop.f32.mrf.mxu0
      %v830 = vadd.f32 0.0, %v829
      %v831 = vpop.f32.mrf.mxu0
      %v832 = vadd.f32 0.0, %v831
      %833 = vdwg.mxu0
      %v834 = vld [vmem:[#allocation2] sm:$0xf]
      %v835 = vld [vmem:[#allocation2 + $0x8] sm:$0xf]
      %v836 = vld [vmem:[#allocation2 + $0x10] sm:$0xf]
      %v837 = vld [vmem:[#allocation2 + $0x18] sm:$0xf]
      %v838 = vld [vmem:[#allocation2 + $0x20] sm:$0xf]
      %v839 = vld [vmem:[#allocation2 + $0x28] sm:$0xf]
      %v840 = vld [vmem:[#allocation2 + $0x30] sm:$0xf]
      %v841 = vld [vmem:[#allocation2 + $0x38] sm:$0xf]
      %v842 = vld [vmem:[#allocation2 + $0x4] sm:$0x1]
      %v843 = vld [vmem:[#allocation2 + $0xc] sm:$0x1]
      %v844 = vld [vmem:[#allocation2 + $0x14] sm:$0x1]
      %v845 = vld [vmem:[#allocation2 + $0x1c] sm:$0x1]
      %v846 = vld [vmem:[#allocation2 + $0x24] sm:$0x1]
      %v847 = vld [vmem:[#allocation2 + $0x2c] sm:$0x1]
      %v848 = vld [vmem:[#allocation2 + $0x34] sm:$0x1]
      %v849 = vld [vmem:[#allocation2 + $0x3c] sm:$0x1]
      %v850 = vld [vmem:[#allocation2] sm:$0xe]
      %v851 = vld [vmem:[#allocation2 + $0x8] sm:$0xe]
      %v852 = vld [vmem:[#allocation2 + $0x10] sm:$0xe]
      %v853 = vld [vmem:[#allocation2 + $0x18] sm:$0xe]
      %v854 = vld [vmem:[#allocation2 + $0x20] sm:$0xe]
      %v855 = vld [vmem:[#allocation2 + $0x28] sm:$0xe]
      %v856 = vld [vmem:[#allocation2 + $0x30] sm:$0xe]
      %v857 = vld [vmem:[#allocation2 + $0x38] sm:$0xe]
      %v866 = vunpack.c.l.b16 %v834
      %v867 = vunpack.c.l.b16 %v835
      %v868 = vunpack.c.l.b16 %v836
      %v869 = vunpack.c.l.b16 %v837
      %v870 = vunpack.c.l.b16 %v838
      %v871 = vunpack.c.l.b16 %v839
      %v872 = vunpack.c.l.b16 %v840
      %v873 = vunpack.c.l.b16 %v841
      %v874 = vpack.c.b16 %v866, %v866
      %v875 = vpack.c.b16 %v867, %v867
      %v876 = vpack.c.b16 %v868, %v868
      %v877 = vpack.c.b16 %v869, %v869
      %v878 = vpack.c.b16 %v870, %v870
      %v879 = vpack.c.b16 %v871, %v871
      %v880 = vpack.c.b16 %v872, %v872
      %v881 = vpack.c.b16 %v873, %v873
      %882 = vrot.lane.b32.xlu0 %v874, 120
      %v883 = vpop.permute.xlu0 %882
      %884 = vrot.lane.b32.xlu0 %v875, 120
      %v885 = vpop.permute.xlu0 %884
      %886 = vrot.lane.b32.xlu0 %v876, 120
      %v887 = vpop.permute.xlu0 %886
      %888 = vrot.lane.b32.xlu0 %v877, 120
      %v889 = vpop.permute.xlu0 %888
      %890 = vrot.lane.b32.xlu0 %v878, 120
      %v891 = vpop.permute.xlu0 %890
      %892 = vrot.lane.b32.xlu0 %v879, 120
      %v893 = vpop.permute.xlu0 %892
      %894 = vrot.lane.b32.xlu0 %v880, 120
      %v895 = vpop.permute.xlu0 %894
      %896 = vrot.lane.b32.xlu0 %v881, 120
      %v897 = vpop.permute.xlu0 %896
      %v906 = vunpack.c.l.b16 %v842
      %v907 = vunpack.c.l.b16 %v843
      %v908 = vunpack.c.l.b16 %v844
      %v909 = vunpack.c.l.b16 %v845
      %v910 = vunpack.c.l.b16 %v846
      %v911 = vunpack.c.l.b16 %v847
      %v912 = vunpack.c.l.b16 %v848
      %v913 = vunpack.c.l.b16 %v849
      %v914 = vpack.c.b16 %v906, %v866
      %v915 = vpack.c.b16 %v907, %v867
      %v916 = vpack.c.b16 %v908, %v868
      %v917 = vpack.c.b16 %v909, %v869
      %v918 = vpack.c.b16 %v910, %v870
      %v919 = vpack.c.b16 %v911, %v871
      %v920 = vpack.c.b16 %v912, %v872
      %v921 = vpack.c.b16 %v913, %v873
      %v923 = vshrl.u32 %v914, 16
      %v925 = vshll.u32 %v914, 16
      %v927 = vrot.slane %v925, 1
      %v928 = vor.u32 %v923, %v927
      %v930 = vshrl.u32 %v915, 16
      %v932 = vshll.u32 %v915, 16
      %v934 = vrot.slane %v932, 1
      %v935 = vor.u32 %v930, %v934
      %v937 = vshrl.u32 %v916, 16
      %v939 = vshll.u32 %v916, 16
      %v941 = vrot.slane %v939, 1
      %v942 = vor.u32 %v937, %v941
      %v944 = vshrl.u32 %v917, 16
      %v946 = vshll.u32 %v917, 16
      %v948 = vrot.slane %v946, 1
      %v949 = vor.u32 %v944, %v948
      %v951 = vshrl.u32 %v918, 16
      %v953 = vshll.u32 %v918, 16
      %v955 = vrot.slane %v953, 1
      %v956 = vor.u32 %v951, %v955
      %v958 = vshrl.u32 %v919, 16
      %v960 = vshll.u32 %v919, 16
      %v962 = vrot.slane %v960, 1
      %v963 = vor.u32 %v958, %v962
      %v965 = vshrl.u32 %v920, 16
      %v967 = vshll.u32 %v920, 16
      %v969 = vrot.slane %v967, 1
      %v970 = vor.u32 %v965, %v969
      %v972 = vshrl.u32 %v921, 16
      %v974 = vshll.u32 %v921, 16
      %v976 = vrot.slane %v974, 1
      %v977 = vor.u32 %v972, %v976
      %v986 = vunpack.c.l.b16 %v850
      %v987 = vunpack.c.l.b16 %v851
      %v988 = vunpack.c.l.b16 %v852
      %v989 = vunpack.c.l.b16 %v853
      %v990 = vunpack.c.l.b16 %v854
      %v991 = vunpack.c.l.b16 %v855
      %v992 = vunpack.c.l.b16 %v856
      %v993 = vunpack.c.l.b16 %v857
      %v994 = vpack.c.b16 %v906, %v986
      %v995 = vpack.c.b16 %v907, %v987
      %v996 = vpack.c.b16 %v908, %v988
      %v997 = vpack.c.b16 %v909, %v989
      %v998 = vpack.c.b16 %v910, %v990
      %v999 = vpack.c.b16 %v911, %v991
      %v1000 = vpack.c.b16 %v912, %v992
      %v1001 = vpack.c.b16 %v913, %v993
      %v1002 = vrot.slane %v994, 1
      %v1003 = vrot.slane %v995, 1
      %v1004 = vrot.slane %v996, 1
      %v1005 = vrot.slane %v997, 1
      %v1006 = vrot.slane %v998, 1
      %v1007 = vrot.slane %v999, 1
      %v1008 = vrot.slane %v1000, 1
      %v1009 = vrot.slane %v1001, 1
      %1010 = vrot.lane.b32.xlu0 %v1002, 8
      %v1011 = vpop.permute.xlu0 %1010
      %1012 = vrot.lane.b32.xlu0 %v1003, 8
      %v1013 = vpop.permute.xlu0 %1012
      %1014 = vrot.lane.b32.xlu0 %v1004, 8
      %v1015 = vpop.permute.xlu0 %1014
      %1016 = vrot.lane.b32.xlu0 %v1005, 8
      %v1017 = vpop.permute.xlu0 %1016
      %1018 = vrot.lane.b32.xlu0 %v1006, 8
      %v1019 = vpop.permute.xlu0 %1018
      %1020 = vrot.lane.b32.xlu0 %v1007, 8
      %v1021 = vpop.permute.xlu0 %1020
      %1022 = vrot.lane.b32.xlu0 %v1008, 8
      %v1023 = vpop.permute.xlu0 %1022
      %1024 = vrot.lane.b32.xlu0 %v1009, 8
      %v1025 = vpop.permute.xlu0 %1024
      %vm1026 = vcmask 64512
      %v1029 = vsel %vm1026, %v883, %v928
      %v1032 = vsel %vm1026, %v885, %v935
      %v1035 = vsel %vm1026, %v887, %v942
      %v1038 = vsel %vm1026, %v889, %v949
      %v1041 = vsel %vm1026, %v891, %v956
      %v1044 = vsel %vm1026, %v893, %v963
      %v1047 = vsel %vm1026, %v895, %v970
      %v1050 = vsel %vm1026, %v897, %v977
      %v1052 = vsel %vm706, %v1029, %v1011
      %v1054 = vsel %vm706, %v1032, %v1013
      %v1056 = vsel %vm706, %v1035, %v1015
      %v1058 = vsel %vm706, %v1038, %v1017
      %v1060 = vsel %vm706, %v1041, %v1019
      %v1062 = vsel %vm706, %v1044, %v1021
      %v1064 = vsel %vm706, %v1047, %v1023
      %v1066 = vsel %vm706, %v1050, %v1025
      %v1067 = vld [vmem:[%s294] sm:$0xf]
      %v1068 = vld [vmem:[%s294 + $0x4] sm:$0xf]
      %v1069 = vld [vmem:[%s294 + $0x8] sm:$0xf]
      %v1078 = vunpack.c.l.b16 %v1052
      %v1079 = vunpack.c.l.b16 %v1054
      %v1080 = vunpack.c.l.b16 %v1056
      %v1081 = vunpack.c.l.b16 %v1058
      %v1082 = vunpack.c.l.b16 %v1060
      %v1083 = vunpack.c.l.b16 %v1062
      %v1084 = vunpack.c.l.b16 %v1064
      %v1085 = vunpack.c.l.b16 %v1066
      %v1086 = vpack.c.b16 %v1079, %v1078
      %v1087 = vpack.c.b16 %v1081, %v1080
      %v1088 = vpack.c.b16 %v1083, %v1082
      %v1089 = vpack.c.b16 %v1085, %v1084
      %v1093 = vunpack.c.l.b16 %v1067
      %v1094 = vunpack.c.l.b16 %v1068
      %v1095 = vunpack.c.l.b16 %v1069
      %v1096 = vpack.c.b16 %v1094, %v1093
      %v1097 = vpack.c.b16 %v1095, %v1095
      %vm1099 = vcmask 195584
      %v1101 = vsel %vm1099, %v1086, 0
      %v1104 = vsel %vm1099, %v1087, 0
      %v1107 = vsel %vm1099, %v1088, 0
      %v1110 = vsel %vm1099, %v1089, 0
      %vm1112 = vcmask 1043456
      %v1114 = vsel %vm1112, %v1097, 0
      %1116 = vmatpush.bf16.msra.mxu0 0
      %1117 = vmatpush.bf16.msra.mxu0 0
      %1118 = vmatpush.bf16.msra.mxu0 0
      %1119 = vmatpush.bf16.msra.mxu0 0
      %1120 = vmatpush.bf16.msra.mxu0 0
      %1121 = vmatpush.bf16.msra.mxu0 0
      %1122 = vmatpush.bf16.msra.mxu0 %v1114
      %1123 = vmatpush.bf16.msra.mxu0 %v1096
      %1124 = vmatmul.bf16.gmra.mxu0 %v1101
      %v1125 = vpop.f32.mrf.mxu0
      %v1126 = vadd.f32 0.0, %v1125
      %v1127 = vpop.f32.mrf.mxu0
      %v1128 = vadd.f32 0.0, %v1127
      %1129 = vmatmul.bf16.gmra.mxu0 %v1104
      %v1130 = vpop.f32.mrf.mxu0
      %v1131 = vadd.f32 0.0, %v1130
      %v1132 = vpop.f32.mrf.mxu0
      %v1133 = vadd.f32 0.0, %v1132
      %1134 = vmatmul.bf16.gmra.mxu0 %v1107
      %v1135 = vpop.f32.mrf.mxu0
      %v1136 = vadd.f32 0.0, %v1135
      %v1137 = vpop.f32.mrf.mxu0
      %v1138 = vadd.f32 0.0, %v1137
      %1139 = vmatmul.bf16.gmra.mxu0 %v1110
      %v1140 = vpop.f32.mrf.mxu0
      %v1141 = vadd.f32 0.0, %v1140
      %v1142 = vpop.f32.mrf.mxu0
      %v1143 = vadd.f32 0.0, %v1142
      %1144 = vdwg.mxu0
      %v1145 = vadd.f32 %v815, %v1126
      %v1146 = vadd.f32 %v817, %v1128
      %v1147 = vadd.f32 %v820, %v1131
      %v1148 = vadd.f32 %v822, %v1133
      %v1149 = vadd.f32 %v825, %v1136
      %v1150 = vadd.f32 %v827, %v1138
      %v1151 = vadd.f32 %v830, %v1141
      %v1152 = vadd.f32 %v832, %v1143
      %s1153 = scalar_lea.vmem [#allocation2], 16
      %v1154 = vld [vmem:[%s1153] sm:$0xf]
      %v1155 = vld [vmem:[%s1153 + $0x8] sm:$0xf]
      %v1156 = vld [vmem:[%s1153 + $0x10] sm:$0xf]
      %v1157 = vld [vmem:[%s1153 + $0x18] sm:$0xf]
      %v1158 = vld [vmem:[%s1153 + $0x20] sm:$0xf]
      %v1159 = vld [vmem:[%s1153 + $0x28] sm:$0xf]
      %v1160 = vld [vmem:[%s1153 + $0x30] sm:$0xf]
      %v1161 = vld [vmem:[%s1153 + $0x38] sm:$0xf]
      %v1162 = vld [vmem:[%s1153 + $0x4] sm:$0x1]
      %v1163 = vld [vmem:[%s1153 + $0xc] sm:$0x1]
      %v1164 = vld [vmem:[%s1153 + $0x14] sm:$0x1]
      %v1165 = vld [vmem:[%s1153 + $0x1c] sm:$0x1]
      %v1166 = vld [vmem:[%s1153 + $0x24] sm:$0x1]
      %v1167 = vld [vmem:[%s1153 + $0x2c] sm:$0x1]
      %v1168 = vld [vmem:[%s1153 + $0x34] sm:$0x1]
      %v1169 = vld [vmem:[%s1153 + $0x3c] sm:$0x1]
      %v1170 = vld [vmem:[%s1153] sm:$0xe]
      %v1171 = vld [vmem:[%s1153 + $0x8] sm:$0xe]
      %v1172 = vld [vmem:[%s1153 + $0x10] sm:$0xe]
      %v1173 = vld [vmem:[%s1153 + $0x18] sm:$0xe]
      %v1174 = vld [vmem:[%s1153 + $0x20] sm:$0xe]
      %v1175 = vld [vmem:[%s1153 + $0x28] sm:$0xe]
      %v1176 = vld [vmem:[%s1153 + $0x30] sm:$0xe]
      %v1177 = vld [vmem:[%s1153 + $0x38] sm:$0xe]
      %v1194 = vunpack.c.l.b16 %v1154
      %v1195 = vunpack.c.l.b16 %v1162
      %v1196 = vunpack.c.l.b16 %v1155
      %v1197 = vunpack.c.l.b16 %v1163
      %v1198 = vunpack.c.l.b16 %v1156
      %v1199 = vunpack.c.l.b16 %v1164
      %v1200 = vunpack.c.l.b16 %v1157
      %v1201 = vunpack.c.l.b16 %v1165
      %v1202 = vunpack.c.l.b16 %v1158
      %v1203 = vunpack.c.l.b16 %v1166
      %v1204 = vunpack.c.l.b16 %v1159
      %v1205 = vunpack.c.l.b16 %v1167
      %v1206 = vunpack.c.l.b16 %v1160
      %v1207 = vunpack.c.l.b16 %v1168
      %v1208 = vunpack.c.l.b16 %v1161
      %v1209 = vunpack.c.l.b16 %v1169
      %v1210 = vpack.c.b16 %v1195, %v1194
      %v1211 = vpack.c.b16 %v1197, %v1196
      %v1212 = vpack.c.b16 %v1199, %v1198
      %v1213 = vpack.c.b16 %v1201, %v1200
      %v1214 = vpack.c.b16 %v1203, %v1202
      %v1215 = vpack.c.b16 %v1205, %v1204
      %v1216 = vpack.c.b16 %v1207, %v1206
      %v1217 = vpack.c.b16 %v1209, %v1208
      %v1219 = vshrl.u32 %v1210, 16
      %v1221 = vshll.u32 %v1210, 16
      %v1223 = vrot.slane %v1221, 1
      %v1224 = vor.u32 %v1219, %v1223
      %v1226 = vshrl.u32 %v1211, 16
      %v1228 = vshll.u32 %v1211, 16
      %v1230 = vrot.slane %v1228, 1
      %v1231 = vor.u32 %v1226, %v1230
      %v1233 = vshrl.u32 %v1212, 16
      %v1235 = vshll.u32 %v1212, 16
      %v1237 = vrot.slane %v1235, 1
      %v1238 = vor.u32 %v1233, %v1237
      %v1240 = vshrl.u32 %v1213, 16
      %v1242 = vshll.u32 %v1213, 16
      %v1244 = vrot.slane %v1242, 1
      %v1245 = vor.u32 %v1240, %v1244
      %v1247 = vshrl.u32 %v1214, 16
      %v1249 = vshll.u32 %v1214, 16
      %v1251 = vrot.slane %v1249, 1
      %v1252 = vor.u32 %v1247, %v1251
      %v1254 = vshrl.u32 %v1215, 16
      %v1256 = vshll.u32 %v1215, 16
      %v1258 = vrot.slane %v1256, 1
      %v1259 = vor.u32 %v1254, %v1258
      %v1261 = vshrl.u32 %v1216, 16
      %v1263 = vshll.u32 %v1216, 16
      %v1265 = vrot.slane %v1263, 1
      %v1266 = vor.u32 %v1261, %v1265
      %v1268 = vshrl.u32 %v1217, 16
      %v1270 = vshll.u32 %v1217, 16
      %v1272 = vrot.slane %v1270, 1
      %v1273 = vor.u32 %v1268, %v1272
      %1274 = vrot.lane.b32.xlu0 %v1224, 8
      %v1275 = vpop.permute.xlu0 %1274
      %1276 = vrot.lane.b32.xlu0 %v1231, 8
      %v1277 = vpop.permute.xlu0 %1276
      %1278 = vrot.lane.b32.xlu0 %v1238, 8
      %v1279 = vpop.permute.xlu0 %1278
      %1280 = vrot.lane.b32.xlu0 %v1245, 8
      %v1281 = vpop.permute.xlu0 %1280
      %1282 = vrot.lane.b32.xlu0 %v1252, 8
      %v1283 = vpop.permute.xlu0 %1282
      %1284 = vrot.lane.b32.xlu0 %v1259, 8
      %v1285 = vpop.permute.xlu0 %1284
      %1286 = vrot.lane.b32.xlu0 %v1266, 8
      %v1287 = vpop.permute.xlu0 %1286
      %1288 = vrot.lane.b32.xlu0 %v1273, 8
      %v1289 = vpop.permute.xlu0 %1288
      %v1298 = vunpack.c.l.b16 %v1170
      %v1299 = vunpack.c.l.b16 %v1171
      %v1300 = vunpack.c.l.b16 %v1172
      %v1301 = vunpack.c.l.b16 %v1173
      %v1302 = vunpack.c.l.b16 %v1174
      %v1303 = vunpack.c.l.b16 %v1175
      %v1304 = vunpack.c.l.b16 %v1176
      %v1305 = vunpack.c.l.b16 %v1177
      %v1306 = vpack.c.b16 %v1195, %v1298
      %v1307 = vpack.c.b16 %v1197, %v1299
      %v1308 = vpack.c.b16 %v1199, %v1300
      %v1309 = vpack.c.b16 %v1201, %v1301
      %v1310 = vpack.c.b16 %v1203, %v1302
      %v1311 = vpack.c.b16 %v1205, %v1303
      %v1312 = vpack.c.b16 %v1207, %v1304
      %v1313 = vpack.c.b16 %v1209, %v1305
      %v1314 = vrot.slane %v1306, 1
      %v1315 = vrot.slane %v1307, 1
      %v1316 = vrot.slane %v1308, 1
      %v1317 = vrot.slane %v1309, 1
      %v1318 = vrot.slane %v1310, 1
      %v1319 = vrot.slane %v1311, 1
      %v1320 = vrot.slane %v1312, 1
      %v1321 = vrot.slane %v1313, 1
      %1322 = vrot.lane.b32.xlu0 %v1314, 16
      %v1323 = vpop.permute.xlu0 %1322
      %1324 = vrot.lane.b32.xlu0 %v1315, 16
      %v1325 = vpop.permute.xlu0 %1324
      %1326 = vrot.lane.b32.xlu0 %v1316, 16
      %v1327 = vpop.permute.xlu0 %1326
      %1328 = vrot.lane.b32.xlu0 %v1317, 16
      %v1329 = vpop.permute.xlu0 %1328
      %1330 = vrot.lane.b32.xlu0 %v1318, 16
      %v1331 = vpop.permute.xlu0 %1330
      %1332 = vrot.lane.b32.xlu0 %v1319, 16
      %v1333 = vpop.permute.xlu0 %1332
      %1334 = vrot.lane.b32.xlu0 %v1320, 16
      %v1335 = vpop.permute.xlu0 %1334
      %1336 = vrot.lane.b32.xlu0 %v1321, 16
      %v1337 = vpop.permute.xlu0 %1336
      %v1340 = vsel %vm1026, %v1154, %v1275
      %v1343 = vsel %vm1026, %v1155, %v1277
      %v1346 = vsel %vm1026, %v1156, %v1279
      %v1349 = vsel %vm1026, %v1157, %v1281
      %v1352 = vsel %vm1026, %v1158, %v1283
      %v1355 = vsel %vm1026, %v1159, %v1285
      %v1358 = vsel %vm1026, %v1160, %v1287
      %v1361 = vsel %vm1026, %v1161, %v1289
      %v1363 = vsel %vm706, %v1340, %v1323
      %v1365 = vsel %vm706, %v1343, %v1325
      %v1367 = vsel %vm706, %v1346, %v1327
      %v1369 = vsel %vm706, %v1349, %v1329
      %v1371 = vsel %vm706, %v1352, %v1331
      %v1373 = vsel %vm706, %v1355, %v1333
      %v1375 = vsel %vm706, %v1358, %v1335
      %v1377 = vsel %vm706, %v1361, %v1337
      %v1378 = vld [vmem:[%s298] sm:$0xf]
      %v1379 = vld [vmem:[%s298 + $0x4] sm:$0xf]
      %v1380 = vld [vmem:[%s298 + $0x8] sm:$0xf]
      %v1389 = vunpack.c.l.b16 %v1363
      %v1390 = vunpack.c.l.b16 %v1365
      %v1391 = vunpack.c.l.b16 %v1367
      %v1392 = vunpack.c.l.b16 %v1369
      %v1393 = vunpack.c.l.b16 %v1371
      %v1394 = vunpack.c.l.b16 %v1373
      %v1395 = vunpack.c.l.b16 %v1375
      %v1396 = vunpack.c.l.b16 %v1377
      %v1397 = vpack.c.b16 %v1390, %v1389
      %v1398 = vpack.c.b16 %v1392, %v1391
      %v1399 = vpack.c.b16 %v1394, %v1393
      %v1400 = vpack.c.b16 %v1396, %v1395
      %v1404 = vunpack.c.l.b16 %v1378
      %v1405 = vunpack.c.l.b16 %v1379
      %v1406 = vunpack.c.l.b16 %v1380
      %v1407 = vpack.c.b16 %v1405, %v1404
      %v1408 = vpack.c.b16 %v1406, %v1406
      %v1411 = vsel %vm1099, %v1397, 0
      %v1414 = vsel %vm1099, %v1398, 0
      %v1417 = vsel %vm1099, %v1399, 0
      %v1420 = vsel %vm1099, %v1400, 0
      %v1423 = vsel %vm1112, %v1408, 0
      %1425 = vmatpush.bf16.msra.mxu0 0
      %1426 = vmatpush.bf16.msra.mxu0 0
      %1427 = vmatpush.bf16.msra.mxu0 0
      %1428 = vmatpush.bf16.msra.mxu0 0
      %1429 = vmatpush.bf16.msra.mxu0 0
      %1430 = vmatpush.bf16.msra.mxu0 0
      %1431 = vmatpush.bf16.msra.mxu0 %v1423
      %1432 = vmatpush.bf16.msra.mxu0 %v1407
      %1433 = vmatmul.bf16.gmra.mxu0 %v1411
      %v1434 = vpop.f32.mrf.mxu0
      %v1435 = vadd.f32 0.0, %v1434
      %v1436 = vpop.f32.mrf.mxu0
      %v1437 = vadd.f32 0.0, %v1436
      %1438 = vmatmul.bf16.gmra.mxu0 %v1414
      %v1439 = vpop.f32.mrf.mxu0
      %v1440 = vadd.f32 0.0, %v1439
      %v1441 = vpop.f32.mrf.mxu0
      %v1442 = vadd.f32 0.0, %v1441
      %1443 = vmatmul.bf16.gmra.mxu0 %v1417
      %v1444 = vpop.f32.mrf.mxu0
      %v1445 = vadd.f32 0.0, %v1444
      %v1446 = vpop.f32.mrf.mxu0
      %v1447 = vadd.f32 0.0, %v1446
      %1448 = vmatmul.bf16.gmra.mxu0 %v1420
      %v1449 = vpop.f32.mrf.mxu0
      %v1450 = vadd.f32 0.0, %v1449
      %v1451 = vpop.f32.mrf.mxu0
      %v1452 = vadd.f32 0.0, %v1451
      %1453 = vdwg.mxu0
      %v1454 = vadd.f32 %v1145, %v1435
      %v1455 = vadd.f32 %v1146, %v1437
      %v1456 = vadd.f32 %v1147, %v1440
      %v1457 = vadd.f32 %v1148, %v1442
      %v1458 = vadd.f32 %v1149, %v1445
      %v1459 = vadd.f32 %v1150, %v1447
      %v1460 = vadd.f32 %v1151, %v1450
      %v1461 = vadd.f32 %v1152, %v1452
      %v1462 = vld [vmem:[%s301] sm:$0x1]
      %v1464 = vperm.slane %v1462, 0
      %v1466 = vadd.f32 %v1454, %v1464
      %v1467 = vadd.f32 %v1455, %v1464
      %v1468 = vadd.f32 %v1456, %v1464
      %v1469 = vadd.f32 %v1457, %v1464
      %v1470 = vadd.f32 %v1458, %v1464
      %v1471 = vadd.f32 %v1459, %v1464
      %v1472 = vadd.f32 %v1460, %v1464
      %v1473 = vadd.f32 %v1461, %v1464
      %1474 = vst.msk [vmem:[%s309] sm:$0xff] %vm1026, %v1466
      %1475 = vst.msk [vmem:[%s309 + $0x8] sm:$0xff] %vm1026, %v1467
      %1476 = vst.msk [vmem:[%s309 + $0x10] sm:$0xff] %vm1026, %v1468
      %1477 = vst.msk [vmem:[%s309 + $0x18] sm:$0xff] %vm1026, %v1469
      %1478 = vst.msk [vmem:[%s309 + $0x20] sm:$0xff] %vm1026, %v1470
      %1479 = vst.msk [vmem:[%s309 + $0x28] sm:$0xff] %vm1026, %v1471
      %1480 = vst.msk [vmem:[%s309 + $0x30] sm:$0xff] %vm1026, %v1472
      %1481 = vst.msk [vmem:[%s309 + $0x38] sm:$0xff] %vm1026, %v1473
      %p1482 = scmp.lt.s32.totalorder %s20, 1
      %s1483 = scalar_select %p1482, %s20, 1
      %p1484 = scmp.lt.s32.totalorder %s21, 0
      %s1485 = scalar_select %p1484, %s21, 0
      %s1486 = smul.addr %s1483, 8
      %s1487 = sadd.s32 %s1485, %s1486
      %s1488 = smul.addr %s1487, 8
      %s1489 = scalar_lea.vmem %s5, %s1488
      // Predicated region
      $region41: #{a_call__.1} parent=39 // pred_check
        %p1490 = pneg %p178
      $region42: #{a_call__.1} parent=39 // pred_check_branch
        %1492 = sbr.rel (%p1490) target = $region44
      $region43: #{a_call__.1} parent=39 // pred_region
        _
      $region44: #{a_call__.1} parent=39 // pred_fallthru
        _
    $region40: #{a_call__.1} parent=5 // pred_fallthru
      _
    %p1493 = scmp.le.s32.totalorder 2, %s11
    // Predicated region
    $region45: #{a_call__.1} parent=5 // pred_check
      %p1494 = pneg %p1493
    $region46: #{a_call__.1} parent=5 // pred_check_branch
      %1496 = sbr.rel (%p1494) target = $region48
    $region47: #{a_call__.1} parent=5 // pred_region
      %s1497 = ssub.s32 %s11, 2
      // Predicated region
      $region49: #{a_call__.1} parent=47 // pred_check
        %p1498 = pneg %p184
      $region50: #{a_call__.1} parent=47 // pred_check_branch
        %1500 = sbr.rel (%p1498) target = $region52
      $region51: #{a_call__.1} parent=47 // pred_region
        %p1501 = scmp.lt.s32.totalorder %s22, 1
        %s1502 = scalar_select %p1501, %s22, 1
        %p1503 = scmp.lt.s32.totalorder %s23, 0
        %s1504 = scalar_select %p1503, %s23, 0
        %s1505 = smul.addr %s1502, 8
        %s1506 = sadd.s32 %s1504, %s1505
        %s1507 = smul.addr %s1506, 8
        %s1508 = scalar_lea.vmem %s5, %s1507
      $region52: #{a_call__.1} parent=47 // pred_fallthru
        _
    $region48: #{a_call__.1} parent=5 // pred_fallthru
      _
  $region6: #{a_call__.1} parent=0 // loop_footer
    %s15 = sadd.s32 1, %s11
  $region7: #{a_call__.1} parent=0 // loop_footer_branch
    %10 = sbr.rel target = $region3
  $region8: #{a_call__.1} parent=0 // loop_exit
    _

</llo_original>
